<compile_context>
chip_gen: v7x
topology: tpu7x:2x2x1
jax: 0.10.0
libtpu: 0.0.40
codegen_flags: <defaults>
</compile_context>

<pallas_src>
import math

import jax
import jax.numpy as jnp
from jax.experimental import pallas as pl
from jax.experimental.pallas import tpu as pltpu


def _interp_matrix(in_size: int, out_size: int) -> jnp.ndarray:
    """Row-stochastic (out_size, in_size) matrix implementing 1-D linear
    interpolation with align_corners=True (PyTorch convention)."""
    if out_size == 1:
        src = jnp.zeros((1,), dtype=jnp.float32)
    else:
        src = jnp.arange(out_size, dtype=jnp.float32) * (
            (in_size - 1) / (out_size - 1)
        )
    lo = jnp.clip(jnp.floor(src).astype(jnp.int32), 0, in_size - 1)
    hi = jnp.minimum(lo + 1, in_size - 1)
    w_hi = src - lo.astype(jnp.float32)
    w_lo = 1.0 - w_hi
    m = (
        w_lo[:, None] * jax.nn.one_hot(lo, in_size, dtype=jnp.float32)
        + w_hi[:, None] * jax.nn.one_hot(hi, in_size, dtype=jnp.float32)
    )
    return m


def _resize_kernel(x_ref, wy_ref, wxbd_ref, o_ref):
    # x_ref:    (H, TN*W)      TN slabs contiguous along lanes
    # wy_ref:   (OH, H)        row-interp weights with `factor` folded in (resident)
    # wxbd_ref: (TN*W, TN*OW)  kron(I_TN, Wx^T): per-slab column interp (resident)
    # o_ref:    (OH, TN*OW)    lane-dense output slab
    x = x_ref[...].astype(jnp.float32)
    t = jnp.dot(wy_ref[...], x, preferred_element_type=jnp.float32)        # (OH, TN*W)
    y = jnp.dot(t, wxbd_ref[...], preferred_element_type=jnp.float32)      # (OH, TN*OW)
    o_ref[...] = y.astype(o_ref.dtype)


def _choose_tn(n_slabs: int, w: int, ow: int) -> int:
    """How many (H, W) slabs to fuse per grid step.

    TN*W and TN*OW must be multiples of 128 (lane-dense blocks, unmasked stores)
    unless a single block covers the whole array.  Grown toward ~512 lanes to feed
    the MXU, but kept small enough that (a) the grid retains >=2 steps (v7x
    megacore) and (b) the kron(I_TN, Wx^T) weight stays a few MiB (v7x VMEM).
    """
    def lane_unit(d):  # smallest t such that (t * d) % 128 == 0
        return 128 // math.gcd(d, 128)

    tn = math.lcm(lane_unit(w), lane_unit(ow))
    if tn >= n_slabs:
        # One grid step covering every slab: block == full array, so the (8,128)
        # divisibility rule is satisfied by the full-dim exception; no padding.
        return n_slabs
    while (
        tn * min(w, ow) < 512
        and pl.cdiv(n_slabs, 2 * tn) >= 2
        and (2 * tn * w) * (2 * tn * ow) * 4 <= (4 << 20)
    ):
        tn *= 2
    return tn


def resize_transform(x: jnp.ndarray, vel_resize: float, ndims: int = 2) -> jnp.ndarray:
    """Pallas implementation of ResizeTransform.forward for ndims=2 (bilinear).

    x: (B, C, H, W), NCHW layout (C = vector-field components).
    """
    assert ndims == 2, "this kernel implements the bilinear (ndims=2) path"
    # TODO(synk): ndims=1/3 ('linear'/'trilinear') interpolation paths not implemented.
    factor = 1.0 / vel_resize
    if factor == 1.0:
        return x

    B, C, H, W = x.shape
    OH = int(math.floor(H * factor))
    OW = int(math.floor(W * factor))
    N = B * C

    TN = _choose_tn(N, W, OW)
    Np = pl.cdiv(N, TN) * TN
    n_steps = Np // TN

    # Host-side weight prep: fold the scalar factor into Wy (linear map, scale
    # commutes); pre-transpose Wx and expand block-diagonally so the kernel runs
    # two plain 2-D MXU matmuls with no per-step transpose.
    wy = (factor * _interp_matrix(H, OH)).astype(jnp.float32)            # (OH, H)
    wxT = jnp.transpose(_interp_matrix(W, OW)).astype(jnp.float32)       # (W, OW)
    wxbd = jnp.kron(jnp.eye(TN, dtype=jnp.float32), wxT)                 # (TN*W, TN*OW)

    # Lane-dense layout: slabs side by side along the lane (last) dimension.
    xf = x.reshape(N, H, W)
    if Np != N:
        xf = jnp.pad(xf, ((0, Np - N), (0, 0), (0, 0)))
    x_lanes = jnp.transpose(xf, (1, 0, 2)).reshape(H, Np * W)            # (H, Np*W)

    out = pl.pallas_call(
        _resize_kernel,
        out_shape=jax.ShapeDtypeStruct((OH, Np * OW), x.dtype),
        grid_spec=pltpu.PrefetchScalarGridSpec(
            num_scalar_prefetch=0,
            grid=(n_steps,),
            in_specs=[
                pl.BlockSpec((H, TN * W), lambda n: (0, n)),        # TN slabs, lane-dense
                pl.BlockSpec((OH, H), lambda n: (0, 0)),            # Wy: resident
                pl.BlockSpec((TN * W, TN * OW), lambda n: (0, 0)),  # kron(I, Wx^T): resident
            ],
            out_specs=pl.BlockSpec((OH, TN * OW), lambda n: (0, n)),
        ),
        compiler_params=pltpu.CompilerParams(
            dimension_semantics=("parallel",),
        ),
    )(x_lanes, wy, wxbd)

    # (OH, Np*OW) -> (Np, OH, OW) -> (B, C, OH, OW): wrapper-side layout plumbing.
    y = out.reshape(OH, Np, OW)[:, :N, :]
    y = jnp.transpose(y, (1, 0, 2)).reshape(B, C, OH, OW)
    return y


def _reference(x, vel_resize):
    """Plain-JAX reference with the module's exact scaling order."""
    factor = 1.0 / vel_resize
    if factor == 1.0:
        return x
    B, C, H, W = x.shape
    OH = int(math.floor(H * factor))
    OW = int(math.floor(W * factor))
    wy = _interp_matrix(H, OH)
    wx = _interp_matrix(W, OW)
    xf = x.astype(jnp.float32)
    if factor > 1.0:
        xf = factor * xf
    y = jnp.einsum("oh,bchw->bcow", wy, xf)
    y = jnp.einsum("bcow,pw->bcop", y, wx)
    if factor < 1.0:
        y = factor * y
    return y.astype(x.dtype)


if __name__ == "__main__":
    key = jax.random.PRNGKey(0)
    B, C, H, W = 2, 4, 16, 16          # C plays the role of the vector-field components
    vel_resize = 0.5                   # factor = 2.0 -> scale then upsample to 32x32
    x = jax.random.normal(key, (B, C, H, W), dtype=jnp.float32)

    out = jax.block_until_ready(resize_transform(x, vel_resize, ndims=2))
    ref = _reference(x, vel_resize)
    assert out.shape == (B, C, 32, 32), out.shape
    assert jnp.allclose(out, ref, atol=1e-5, rtol=1e-5), "mismatch vs reference"

    # also exercise the downsampling (factor < 1) branch
    out_dn = jax.block_until_ready(resize_transform(x, 2.0, ndims=2))  # factor = 0.5 -> 8x8
    ref_dn = _reference(x, 2.0)
    assert out_dn.shape == (B, C, 8, 8), out_dn.shape
    assert jnp.allclose(out_dn, ref_dn, atol=1e-5, rtol=1e-5), "mismatch vs reference (downsample)"

    print("KERNEL_OK")
</pallas_src>

<mosaic_0001>
module attributes {stable_mosaic.version = 11 : i64} {
  func.func @_resize_kernel(%arg0: i32, %arg1: memref<16x128xf32, #tpu.memory_space<vmem>>, %arg2: memref<32x16xf32, #tpu.memory_space<vmem>>, %arg3: memref<128x256xf32, #tpu.memory_space<vmem>>, %arg4: memref<32x256xf32, #tpu.memory_space<vmem>>) attributes {dimension_semantics = [#tpu.dimension_semantics<parallel>], iteration_bounds = array<i64: 1>, scalar_prefetch = 0 : i64, scratch_operands = 0 : i64, tpu.core_type = #tpu.core_type<tc>, window_params = [{transform_indices = @transform_0, window_bounds = array<i64: 16, 128>}, {pipeline_mode = #tpu.pipeline_mode<synchronous>, transform_indices = @transform_1, window_bounds = array<i64: 32, 16>}, {pipeline_mode = #tpu.pipeline_mode<synchronous>, transform_indices = @transform_2, window_bounds = array<i64: 128, 256>}, {transform_indices = @transform_3, window_bounds = array<i64: 32, 256>}]} {
    %c0 = arith.constant 0 : index
    %c0_0 = arith.constant 0 : index
    %0 = vector.load %arg1[%c0, %c0_0] : memref<16x128xf32, #tpu.memory_space<vmem>>, vector<16x128xf32>
    %c0_1 = arith.constant 0 : index
    %c0_2 = arith.constant 0 : index
    %1 = vector.load %arg2[%c0_1, %c0_2] : memref<32x16xf32, #tpu.memory_space<vmem>>, vector<32x16xf32>
    %cst = arith.constant dense<0.000000e+00> : vector<32x128xf32>
    %2 = tpu.matmul %1, %0, %cst {dimension_numbers = #tpu.dot_dimension_numbers<[1], [0], [0], [1], [0, 0, 1, 1], [], []>} : vector<32x16xf32>, vector<16x128xf32>, vector<32x128xf32> -> vector<32x128xf32>
    %c0_3 = arith.constant 0 : index
    %c0_4 = arith.constant 0 : index
    %3 = vector.load %arg3[%c0_3, %c0_4] : memref<128x256xf32, #tpu.memory_space<vmem>>, vector<128x256xf32>
    %cst_5 = arith.constant dense<0.000000e+00> : vector<32x256xf32>
    %4 = tpu.matmul %2, %3, %cst_5 {dimension_numbers = #tpu.dot_dimension_numbers<[1], [0], [0], [1], [0, 0, 1, 1], [], []>} : vector<32x128xf32>, vector<128x256xf32>, vector<32x256xf32> -> vector<32x256xf32>
    %c0_6 = arith.constant 0 : index
    %c0_7 = arith.constant 0 : index
    %5 = vector.load %arg4[%c0_6, %c0_7] : memref<32x256xf32, #tpu.memory_space<vmem>>, vector<32x256xf32>
    tpu.vector_store %arg4[%c0_6, %c0_7], %4 {strides = array<i32>} : memref<32x256xf32, #tpu.memory_space<vmem>>, vector<32x256xf32>,
    return
  }
  func.func @transform_0(%arg0: i32) -> (i32, i32) {
    %c0_i32 = arith.constant 0 : i32
    %c0_i32_0 = arith.constant 0 : i32
    return %c0_i32, %arg0 : i32, i32
  }
  func.func @transform_1(%arg0: i32) -> (i32, i32) {
    %c0_i32 = arith.constant 0 : i32
    %c0_i32_0 = arith.constant 0 : i32
    %c0_i32_1 = arith.constant 0 : i32
    return %c0_i32, %c0_i32_0 : i32, i32
  }
  func.func @transform_2(%arg0: i32) -> (i32, i32) {
    %c0_i32 = arith.constant 0 : i32
    %c0_i32_0 = arith.constant 0 : i32
    %c0_i32_1 = arith.constant 0 : i32
    return %c0_i32, %c0_i32_0 : i32, i32
  }
  func.func @transform_3(%arg0: i32) -> (i32, i32) {
    %c0_i32 = arith.constant 0 : i32
    %c0_i32_0 = arith.constant 0 : i32
    return %c0_i32, %arg0 : i32, i32
  }
}

</mosaic_0001>

<llo_original>
// kernel: tpu_custom_call.1
$region0: #{tpu_custom_call.1}
  #allocation0 [shape = 'u32[]', space=smem, size = 0x4, offset = 0x4, fixed_abs, tag = 'smem constant byte address 0x4 - core index']
  #allocation1 [shape = 'u32[144,128]{1,0:T(1,128)}', space=vmem, size = 0x12000, scoped, tag = 'internal scratch']
  %s0 = inlined_call_operand.vmem [shape: f32[16,128], index: 0, kind: input, shape index: {}]
  %s1 = inlined_call_operand.vmem [shape: f32[32,16], index: 1, kind: input, shape index: {}]
  %s2 = inlined_call_operand.hbm [shape: f32[128,256], index: 2, kind: input, shape index: {}]
  %s3 = inlined_call_operand.hbm [shape: f32[32,256], index: 3, kind: output, shape index: {}]
  %s4 = sld [smem:[#allocation0]]
  $region26: #{tpu_custom_call.1} parent=0
    _
  %s6 = ssub.s32 1, %s4
  %s7 = scalar_select 0, %s6, %s4
  $region1: #{tpu_custom_call.1} parent=0
    #allocation2 [shape = 'u8[131072]{0}', space=vmem, size = 0x20000, scoped, tag = 'input window, operand 2, single buffered']
    #allocation3 [shape = 's32[1]{0}', space=sflag, size = 0x4, scoped, tag = 'scoped memory for tpu_custom_call.1']
    #allocation4 [shape = 's32[1]{0}', space=sflag, size = 0x4, scoped, tag = 'scoped memory for tpu_custom_call.1']
    #allocation5 [shape = 'u8[32768]{0}', space=vmem, size = 0x8000, scoped, tag = 'output window, operand 0, single buffered']
    %8 = vsyncpa [#allocation3], 0
    %9 = vsyncpa [#allocation4], 0
    // Predicated region
    $region2: #{tpu_custom_call.1} parent=1 // pred_check
      _
    $region3: #{tpu_custom_call.1} parent=1 // pred_check_branch
      %11 = sbr.rel (0) target = $region5
    $region4: #{tpu_custom_call.1} parent=1 // pred_region
      _
    $region5: #{tpu_custom_call.1} parent=1 // pred_fallthru
      _
    // Predicated region
    $region6: #{tpu_custom_call.1} parent=1 // pred_check
      _
    $region7: #{tpu_custom_call.1} parent=1 // pred_check_branch
      %13 = sbr.rel (0) target = $region9
    $region8: #{tpu_custom_call.1} parent=1 // pred_region
      _
    $region9: #{tpu_custom_call.1} parent=1 // pred_fallthru
      _
    // Predicated region
    $region10: #{tpu_custom_call.1} parent=1 // pred_check
      _
    $region11: #{tpu_custom_call.1} parent=1 // pred_check_branch
      %15 = sbr.rel (0) target = $region13
    $region12: #{tpu_custom_call.1} parent=1 // pred_region
      %s17 = ssub.s32 4096, 4096
      %18 = vsyncadd [#allocation3], %s17
      %s19 = sshll.u32 [#allocation2], 4
      %s20 = int_to_ptr.vmem [resolvable:$true] %s19
      %25 = dma.hbm_to_vmem [thread:$0]  %s2, 4096, %s20, [#allocation3], 256, 256, 16
    $region13: #{tpu_custom_call.1} parent=1 // pred_fallthru
      _
    // Predicated region
    $region14: #{tpu_custom_call.1} parent=1 // pred_check
      _
    $region15: #{tpu_custom_call.1} parent=1 // pred_check_branch
      %27 = sbr.rel (0) target = $region17
    $region16: #{tpu_custom_call.1} parent=1 // pred_region
      %28 = dma.done [#allocation3], 4096
    $region17: #{tpu_custom_call.1} parent=1 // pred_fallthru
      _
    %v29 = vld [vmem:[%s0] sm:$0xff]
    %v30 = vld [vmem:[%s0 + $0x8] sm:$0xff]
    %v31 = vld [vmem:[%s1] sm:$0xff]
    %v32 = vld [vmem:[%s1 + $0x8] sm:$0xff]
    %v33 = vld [vmem:[%s1 + $0x10] sm:$0xff]
    %v34 = vld [vmem:[%s1 + $0x18] sm:$0xff]
    %vm35 = vcmask 130048
    %v37 = vsel %vm35, %v31, 0
    %v40 = vsel %vm35, %v32, 0
    %v43 = vsel %vm35, %v33, 0
    %v46 = vsel %vm35, %v34, 0
    %48 = vmatprep.subr.mxu0 0.0
    %49 = vmatpush1.msra.mxu0 %v29
    %50 = vmatprep.subr.mxu0 0.0
    %51 = vmatpush1.msra.mxu0 %v30
    %52 = vmatprep.subr.mxu0 0.0
    %53 = vmatpush1.msra.mxu0 0.0
    %54 = vmatprep.subr.mxu0 0.0
    %55 = vmatpush1.msra.mxu0 0.0
    %56 = vmatprep.subr.mxu0 0.0
    %57 = vmatpush1.msra.mxu0 0.0
    %58 = vmatprep.subr.mxu0 0.0
    %59 = vmatpush1.msra.mxu0 0.0
    %60 = vmatprep.subr.mxu0 0.0
    %61 = vmatpush1.msra.mxu0 0.0
    %62 = vmatprep.subr.mxu0 0.0
    %63 = vmatpush1.msra.mxu0 0.0
    %64 = vmatprep.subr.mxu0 0.0
    %65 = vmatpush1.msra.mxu0 0.0
    %66 = vmatprep.subr.mxu0 0.0
    %67 = vmatpush1.msra.mxu0 0.0
    %68 = vmatprep.subr.mxu0 0.0
    %69 = vmatpush1.msra.mxu0 0.0
    %70 = vmatprep.subr.mxu0 0.0
    %71 = vmatpush1.msra.mxu0 0.0
    %72 = vmatprep.subr.mxu0 0.0
    %73 = vmatpush1.msra.mxu0 0.0
    %74 = vmatprep.subr.mxu0 0.0
    %75 = vmatpush1.msra.mxu0 0.0
    %76 = vmatprep.subr.mxu0 0.0
    %77 = vmatpush1.msra.mxu0 0.0
    %78 = vmatprep.subr.mxu0 0.0
    %79 = vmatpush1.msra.mxu0 0.0
    %80 = vmatprep.subr.mxu0 0.0
    %81 = vmatpush1.msra.mxu0 0.0
    %82 = vmatprep.subr.mxu0 0.0
    %83 = vmatpush1.msra.mxu0 0.0
    %84 = vmatprep.subr.mxu0 0.0
    %85 = vmatpush1.msra.mxu0 0.0
    %86 = vmatprep.subr.mxu0 0.0
    %87 = vmatpush1.msra.mxu0 0.0
    %88 = vmatprep.subr.mxu0 0.0
    %89 = vmatpush1.msra.mxu0 0.0
    %90 = vmatprep.subr.mxu0 0.0
    %91 = vmatpush1.msra.mxu0 0.0
    %92 = vmatprep.subr.mxu0 0.0
    %93 = vmatpush1.msra.mxu0 0.0
    %94 = vmatprep.subr.mxu0 0.0
    %95 = vmatpush1.msra.mxu0 0.0
    %96 = vmatprep.subr.mxu0 0.0
    %97 = vmatpush1.msra.mxu0 0.0
    %98 = vmatprep.subr.mxu0 0.0
    %99 = vmatpush1.msra.mxu0 0.0
    %100 = vmatprep.subr.mxu0 0.0
    %101 = vmatpush1.msra.mxu0 0.0
    %102 = vmatprep.subr.mxu0 0.0
    %103 = vmatpush1.msra.mxu0 0.0
    %104 = vmatprep.subr.mxu0 0.0
    %105 = vmatpush1.msra.mxu0 0.0
    %106 = vmatprep.subr.mxu0 0.0
    %107 = vmatpush1.msra.mxu0 0.0
    %108 = vmatprep.subr.mxu0 0.0
    %109 = vmatpush1.msra.mxu0 0.0
    %110 = vmatprep.subr.mxu0 0.0
    %111 = vmatpush1.msra.mxu0 0.0
    %112 = vmatprep.mubr.f32.mxu0 0.0
    %113 = vmatmul.mubr.f32.gmra.mrb[0].mxu0 %v37
    %v114 = vpop.f32.mrb[0].mxu0
    %v115 = vadd.f32 0.0, %v114
    %v116 = vpop.f32.mrb[0].mxu0
    %117 = vmatprep.mubr.f32.mxu0 0.0
    %118 = vmatmul.mubr.f32.gmra.mrb[0].mxu0 %v40
    %v119 = vpop.f32.mrb[0].mxu0
    %v120 = vadd.f32 0.0, %v119
    %v121 = vpop.f32.mrb[0].mxu0
    %122 = vmatprep.mubr.f32.mxu0 0.0
    %123 = vmatmul.mubr.f32.gmra.mrb[0].mxu0 %v43
    %v124 = vpop.f32.mrb[0].mxu0
    %v125 = vadd.f32 0.0, %v124
    %v126 = vpop.f32.mrb[0].mxu0
    %127 = vmatprep.mubr.f32.mxu0 0.0
    %128 = vmatmul.mubr.f32.gmra.mrb[0].mxu0 %v46
    %v129 = vpop.f32.mrb[0].mxu0
    %v130 = vadd.f32 0.0, %v129
    %v131 = vpop.f32.mrb[0].mxu0
    %132 = vdwg.mxu0
    %v133 = vld [vmem:[#allocation2] sm:$0xff]
    %v134 = vld [vmem:[#allocation2 + $0x8] sm:$0xff]
    %v135 = vld [vmem:[#allocation2 + $0x10] sm:$0xff]
    %v136 = vld [vmem:[#allocation2 + $0x18] sm:$0xff]
    %v137 = vld [vmem:[#allocation2 + $0x20] sm:$0xff]
    %v138 = vld [vmem:[#allocation2 + $0x28] sm:$0xff]
    %v139 = vld [vmem:[#allocation2 + $0x30] sm:$0xff]
    %v140 = vld [vmem:[#allocation2 + $0x38] sm:$0xff]
    %v141 = vld [vmem:[#allocation2 + $0x40] sm:$0xff]
    %v142 = vld [vmem:[#allocation2 + $0x48] sm:$0xff]
    %v143 = vld [vmem:[#allocation2 + $0x50] sm:$0xff]
    %v144 = vld [vmem:[#allocation2 + $0x58] sm:$0xff]
    %v145 = vld [vmem:[#allocation2 + $0x60] sm:$0xff]
    %v146 = vld [vmem:[#allocation2 + $0x68] sm:$0xff]
    %v147 = vld [vmem:[#allocation2 + $0x70] sm:$0xff]
    %v148 = vld [vmem:[#allocation2 + $0x78] sm:$0xff]
    %v149 = vld [vmem:[#allocation2 + $0x80] sm:$0xff]
    %v150 = vld [vmem:[#allocation2 + $0x88] sm:$0xff]
    %v151 = vld [vmem:[#allocation2 + $0x90] sm:$0xff]
    %v152 = vld [vmem:[#allocation2 + $0x98] sm:$0xff]
    %v153 = vld [vmem:[#allocation2 + $0xa0] sm:$0xff]
    %v154 = vld [vmem:[#allocation2 + $0xa8] sm:$0xff]
    %v155 = vld [vmem:[#allocation2 + $0xb0] sm:$0xff]
    %v156 = vld [vmem:[#allocation2 + $0xb8] sm:$0xff]
    %v157 = vld [vmem:[#allocation2 + $0xc0] sm:$0xff]
    %v158 = vld [vmem:[#allocation2 + $0xc8] sm:$0xff]
    %v159 = vld [vmem:[#allocation2 + $0xd0] sm:$0xff]
    %v160 = vld [vmem:[#allocation2 + $0xd8] sm:$0xff]
    %v161 = vld [vmem:[#allocation2 + $0xe0] sm:$0xff]
    %v162 = vld [vmem:[#allocation2 + $0xe8] sm:$0xff]
    %v163 = vld [vmem:[#allocation2 + $0xf0] sm:$0xff]
    %v164 = vld [vmem:[#allocation2 + $0xf8] sm:$0xff]
    %165 = vmatprep.subr.mxu0 %v134
    %166 = vmatpush1.msra.mxu0 %v133
    %167 = vmatprep.subr.mxu0 %v136
    %168 = vmatpush1.msra.mxu0 %v135
    %169 = vmatprep.subr.mxu0 %v138
    %170 = vmatpush1.msra.mxu0 %v137
    %171 = vmatprep.subr.mxu0 %v140
    %172 = vmatpush1.msra.mxu0 %v139
    %173 = vmatprep.subr.mxu0 %v142
    %174 = vmatpush1.msra.mxu0 %v141
    %175 = vmatprep.subr.mxu0 %v144
    %176 = vmatpush1.msra.mxu0 %v143
    %177 = vmatprep.subr.mxu0 %v146
    %178 = vmatpush1.msra.mxu0 %v145
    %179 = vmatprep.subr.mxu0 %v148
    %180 = vmatpush1.msra.mxu0 %v147
    %181 = vmatprep.subr.mxu0 %v150
    %182 = vmatpush1.msra.mxu0 %v149
    %183 = vmatprep.subr.mxu0 %v152
    %184 = vmatpush1.msra.mxu0 %v151
    %185 = vmatprep.subr.mxu0 %v154
    %186 = vmatpush1.msra.mxu0 %v153
    %187 = vmatprep.subr.mxu0 %v156
    %188 = vmatpush1.msra.mxu0 %v155
    %189 = vmatprep.subr.mxu0 %v158
    %190 = vmatpush1.msra.mxu0 %v157
    %191 = vmatprep.subr.mxu0 %v160
    %192 = vmatpush1.msra.mxu0 %v159
    %193 = vmatprep.subr.mxu0 %v162
    %194 = vmatpush1.msra.mxu0 %v161
    %195 = vmatprep.subr.mxu0 %v164
    %196 = vmatpush1.msra.mxu0 %v163
    %197 = vmatprep.subr.mxu0 0.0
    %198 = vmatpush1.msra.mxu0 0.0
    %199 = vmatprep.subr.mxu0 0.0
    %200 = vmatpush1.msra.mxu0 0.0
    %201 = vmatprep.subr.mxu0 0.0
    %202 = vmatpush1.msra.mxu0 0.0
    %203 = vmatprep.subr.mxu0 0.0
    %204 = vmatpush1.msra.mxu0 0.0
    %205 = vmatprep.subr.mxu0 0.0
    %206 = vmatpush1.msra.mxu0 0.0
    %207 = vmatprep.subr.mxu0 0.0
    %208 = vmatpush1.msra.mxu0 0.0
    %209 = vmatprep.subr.mxu0 0.0
    %210 = vmatpush1.msra.mxu0 0.0
    %211 = vmatprep.subr.mxu0 0.0
    %212 = vmatpush1.msra.mxu0 0.0
    %213 = vmatprep.subr.mxu0 0.0
    %214 = vmatpush1.msra.mxu0 0.0
    %215 = vmatprep.subr.mxu0 0.0
    %216 = vmatpush1.msra.mxu0 0.0
    %217 = vmatprep.subr.mxu0 0.0
    %218 = vmatpush1.msra.mxu0 0.0
    %219 = vmatprep.subr.mxu0 0.0
    %220 = vmatpush1.msra.mxu0 0.0
    %221 = vmatprep.subr.mxu0 0.0
    %222 = vmatpush1.msra.mxu0 0.0
    %223 = vmatprep.subr.mxu0 0.0
    %224 = vmatpush1.msra.mxu0 0.0
    %225 = vmatprep.subr.mxu0 0.0
    %226 = vmatpush1.msra.mxu0 0.0
    %227 = vmatprep.subr.mxu0 0.0
    %228 = vmatpush1.msra.mxu0 0.0
    %229 = vmatprep.mubr.f32.mxu0 0.0
    %230 = vmatmul.mubr.f32.gmra.mrb[0].mxu0 %v115
    %v231 = vpop.f32.mrb[0].mxu0
    %v232 = vadd.f32 0.0, %v231
    %v233 = vpop.f32.mrb[0].mxu0
    %v234 = vadd.f32 0.0, %v233
    %235 = vmatprep.mubr.f32.mxu0 0.0
    %236 = vmatmul.mubr.f32.gmra.mrb[0].mxu0 %v120
    %v237 = vpop.f32.mrb[0].mxu0
    %v238 = vadd.f32 0.0, %v237
    %v239 = vpop.f32.mrb[0].mxu0
    %v240 = vadd.f32 0.0, %v239
    %241 = vmatprep.mubr.f32.mxu0 0.0
    %242 = vmatmul.mubr.f32.gmra.mrb[0].mxu0 %v125
    %v243 = vpop.f32.mrb[0].mxu0
    %v244 = vadd.f32 0.0, %v243
    %v245 = vpop.f32.mrb[0].mxu0
    %v246 = vadd.f32 0.0, %v245
    %247 = vmatprep.mubr.f32.mxu0 0.0
    %248 = vmatmul.mubr.f32.gmra.mrb[0].mxu0 %v130
    %v249 = vpop.f32.mrb[0].mxu0
    %v250 = vadd.f32 0.0, %v249
    %v251 = vpop.f32.mrb[0].mxu0
    %v252 = vadd.f32 0.0, %v251
    %253 = vdwg.mxu0
    %254 = vst [vmem:[#allocation5] sm:$0xff] %v232
    %255 = vst [vmem:[#allocation5 + $0x8] sm:$0xff] %v234
    %256 = vst [vmem:[#allocation5 + $0x10] sm:$0xff] %v238
    %257 = vst [vmem:[#allocation5 + $0x18] sm:$0xff] %v240
    %258 = vst [vmem:[#allocation5 + $0x20] sm:$0xff] %v244
    %259 = vst [vmem:[#allocation5 + $0x28] sm:$0xff] %v246
    %260 = vst [vmem:[#allocation5 + $0x30] sm:$0xff] %v250
    %261 = vst [vmem:[#allocation5 + $0x38] sm:$0xff] %v252
    // Predicated region
    $region18: #{tpu_custom_call.1} parent=1 // pred_check
      _
    $region19: #{tpu_custom_call.1} parent=1 // pred_check_branch
      %263 = sbr.rel (0) target = $region21
    $region20: #{tpu_custom_call.1} parent=1 // pred_region
      %s265 = ssub.s32 1024, 1024
      %266 = vsyncadd [#allocation4], %s265
      %s267 = sshll.u32 [#allocation5], 4
      %s268 = int_to_ptr.vmem [resolvable:$true] %s267
      %273 = dma.vmem_to_hbm [thread:$0]  %s268, 1024, %s3, [#allocation4], 256, 256, 16
    $region21: #{tpu_custom_call.1} parent=1 // pred_fallthru
      _
    // Predicated region
    $region22: #{tpu_custom_call.1} parent=1 // pred_check
      _
    $region23: #{tpu_custom_call.1} parent=1 // pred_check_branch
      %275 = sbr.rel (0) target = $region25
    $region24: #{tpu_custom_call.1} parent=1 // pred_region
      %276 = dma.done [#allocation4], 1024
    $region25: #{tpu_custom_call.1} parent=1 // pred_fallthru
      _
    %277 = vsyncpa [#allocation3], 1
    %278 = vsyncpa [#allocation4], 1

</llo_original>
